<compile_context>
chip_gen: v5e
topology: v5e:2x2
jax: 0.10.0
libtpu: 0.0.40
codegen_flags: <defaults>
</compile_context>

<pallas_src>
import functools

import jax
import jax.numpy as jnp
from jax.experimental import pallas as pl
from jax.experimental.pallas import tpu as pltpu


# ----------------------------------------------------------------------------
# Helpers
# ----------------------------------------------------------------------------
def _round_up(n, m):
    return ((n + m - 1) // m) * m


def _pad2(a, rows, cols):
    """Zero-pad a 2-D array up to (rows, cols)."""
    return jnp.pad(a, ((0, rows - a.shape[0]), (0, cols - a.shape[1])))


def _full_spec(shape):
    """Full-extent BlockSpec (gridless pallas_call -> index_map takes no args)."""
    return pl.BlockSpec(shape, lambda *_: (0,) * len(shape))


# ----------------------------------------------------------------------------
# Fused Pallas kernel: encode -> reparameterize -> decode, all in VMEM.
# ----------------------------------------------------------------------------
def _vae_fused_kernel(*refs, n_enc, n_dec, lat_pad):
    # refs layout:
    #   inputs : x, eps,
    #            [enc_w, enc_b] * n_enc,
    #            w_mu_logvar (fused), b_mu_logvar (fused),
    #            [dec_w, dec_b] * n_dec,
    #            w_out, b_out
    #   outputs: recon, mu, logvar
    recon_ref, mu_ref, logvar_ref = refs[-3], refs[-2], refs[-1]
    it = iter(refs[:-3])
    x_ref = next(it)
    eps_ref = next(it)

    def dense(h_f32, w_ref, b_ref):
        # bf16 MXU operands, f32 accumulation; bias add on the VPU in f32.
        return (jnp.dot(h_f32.astype(jnp.bfloat16), w_ref[...],
                        preferred_element_type=jnp.float32)
                + b_ref[...])

    # ---- encoder ----
    h = x_ref[...]
    for _ in range(n_enc):
        w_ref, b_ref = next(it), next(it)
        h = jnp.maximum(dense(h, w_ref, b_ref), 0.0)

    # ---- fused latent projection: one 2*Lp-wide matmul, split at lane 128k ----
    w_ml, b_ml = next(it), next(it)
    ml = dense(h, w_ml, b_ml)               # (Bp, 2*Lp)
    mu = ml[:, :lat_pad]
    logvar = ml[:, lat_pad:]

    # ---- reparameterize: z = mu + eps * exp(0.5 * logvar)  (exp -> EUP) ----
    z = mu + eps_ref[...] * jnp.exp(0.5 * logvar)

    # ---- decoder ----
    h = z
    for _ in range(n_dec):
        w_ref, b_ref = next(it), next(it)
        h = jnp.maximum(dense(h, w_ref, b_ref), 0.0)

    # ---- output layer + sigmoid ----
    w_out, b_out = next(it), next(it)
    x_rec = jax.nn.sigmoid(dense(h, w_out, b_out))

    recon_ref[...] = x_rec.astype(recon_ref.dtype)
    mu_ref[...] = mu.astype(mu_ref.dtype)
    logvar_ref[...] = logvar.astype(logvar_ref.dtype)


# ----------------------------------------------------------------------------
# One-time parameter preparation (pad to (8,128) tiles, cast weights to bf16,
# fuse mu|logvar projection).  NOT in the per-call hot path.
# ----------------------------------------------------------------------------
def prepare_padded_params(params, weight_dtype=jnp.bfloat16):
    def pad_w(w):
        return _pad2(w, _round_up(w.shape[0], 128),
                     _round_up(w.shape[1], 128)).astype(weight_dtype)

    def pad_b(b):
        return _pad2(b, 1, _round_up(b.shape[1], 128)).astype(jnp.float32)

    flat = []
    for w, b in params["encoder"]:
        flat += [pad_w(w), pad_b(b)]

    # Fused mu|logvar: concat along the output (lane) dim at a 128 boundary.
    w_mu, b_mu = params["fc_mu"]
    w_lv, b_lv = params["fc_logvar"]
    flat += [jnp.concatenate([pad_w(w_mu), pad_w(w_lv)], axis=1),
             jnp.concatenate([pad_b(b_mu), pad_b(b_lv)], axis=1)]

    for w, b in params["decoder"]:
        flat += [pad_w(w), pad_b(b)]
    flat += [pad_w(params["output_layer"][0]), pad_b(params["output_layer"][1])]
    return flat


# ----------------------------------------------------------------------------
# Forward: pad only x/eps per call, single gridless pallas_call, slice results.
# ----------------------------------------------------------------------------
def vae_forward(padded_params, x, eps, *, n_enc, n_dec):
    B, input_dim = x.shape
    latent_dim = eps.shape[1]

    Bp = _round_up(B, 8)
    Dp = _round_up(input_dim, 128)
    Lp = _round_up(latent_dim, 128)

    x_p = _pad2(x, Bp, Dp)
    eps_p = _pad2(eps, Bp, Lp)

    inputs = [x_p, eps_p] + list(padded_params)
    # Gridless call -> single invocation -> inputs are single-buffered (the
    # read-once weights are not double-buffered).
    in_specs = [_full_spec(a.shape) for a in inputs]

    out_shape = (
        jax.ShapeDtypeStruct((Bp, Dp), x.dtype),   # recon (padded)
        jax.ShapeDtypeStruct((Bp, Lp), x.dtype),   # mu    (padded)
        jax.ShapeDtypeStruct((Bp, Lp), x.dtype),   # logvar(padded)
    )
    out_specs = (_full_spec((Bp, Dp)), _full_spec((Bp, Lp)), _full_spec((Bp, Lp)))

    # --- advisory cost estimate (static shapes) ---
    flops = 0
    for idx in range(2, len(inputs), 2):           # weight tensors
        w = inputs[idx]
        flops += 2 * Bp * w.shape[0] * w.shape[1]
    transcendentals = Bp * Lp + Bp * Dp            # exp + sigmoid
    in_bytes = sum(int(a.size) * a.dtype.itemsize for a in inputs)
    out_bytes = (Bp * Dp + 2 * Bp * Lp) * jnp.dtype(x.dtype).itemsize
    cost = pl.CostEstimate(flops=flops, transcendentals=transcendentals,
                           bytes_accessed=in_bytes + out_bytes)

    # --- explicit VMEM budget: fits v5e's 16 MiB default and v7x's 64 MiB phys ---
    vmem_limit = int(min(max(2 * (in_bytes + out_bytes) + (4 << 20), 16 << 20),
                         64 << 20))

    kernel = functools.partial(_vae_fused_kernel, n_enc=n_enc, n_dec=n_dec,
                               lat_pad=Lp)

    recon_p, mu_p, logvar_p = pl.pallas_call(
        kernel,
        out_shape=out_shape,
        in_specs=in_specs,
        out_specs=out_specs,
        compiler_params=pltpu.CompilerParams(vmem_limit_bytes=vmem_limit),
        cost_estimate=cost,
    )(*inputs)

    # TODO(synk): at production batch sizes, add a batch grid axis
    # (TILE_M >= 256) with dimension_semantics=("parallel",) and weight
    # index_maps returning (0, 0) so weights stay resident across tiles and
    # both v7x TensorCores are used; at B=8 a grid would be pure overhead.
    return (recon_p[:B, :input_dim],
            mu_p[:B, :latent_dim],
            logvar_p[:B, :latent_dim])


# ----------------------------------------------------------------------------
# Parameter init (deterministic, PyTorch-like uniform(-1/sqrt(fan_in), ...))
# ----------------------------------------------------------------------------
def init_linear_params(key, d_in, d_out):
    kw, kb = jax.random.split(key)
    bound = 1.0 / jnp.sqrt(d_in)
    w = jax.random.uniform(kw, (d_in, d_out), jnp.float32, -bound, bound)
    b = jax.random.uniform(kb, (1, d_out), jnp.float32, -bound, bound)
    return w, b


def init_vae_params(key, input_dim, hidden_dims, latent_dim):
    params = {}
    keys = jax.random.split(key, 2 * len(hidden_dims) + 3)
    k_idx = 0

    enc = []
    prev = input_dim
    for h in hidden_dims:
        enc.append(init_linear_params(keys[k_idx], prev, h)); k_idx += 1
        prev = h
    params["encoder"] = enc
    params["fc_mu"] = init_linear_params(keys[k_idx], prev, latent_dim); k_idx += 1
    params["fc_logvar"] = init_linear_params(keys[k_idx], prev, latent_dim); k_idx += 1

    dec = []
    prev = latent_dim
    for h in reversed(hidden_dims):
        dec.append(init_linear_params(keys[k_idx], prev, h)); k_idx += 1
        prev = h
    params["decoder"] = dec
    params["output_layer"] = init_linear_params(keys[k_idx], prev, input_dim); k_idx += 1
    return params


# ----------------------------------------------------------------------------
# Pure-JAX f32 reference (same math) for a correctness check.
# ----------------------------------------------------------------------------
def vae_forward_ref(params, x, eps):
    h = x
    for w, b in params["encoder"]:
        h = jnp.maximum(h @ w + b, 0.0)
    mu = h @ params["fc_mu"][0] + params["fc_mu"][1]
    logvar = h @ params["fc_logvar"][0] + params["fc_logvar"][1]
    z = mu + eps * jnp.exp(0.5 * logvar)
    h = z
    for w, b in params["decoder"]:
        h = jnp.maximum(h @ w + b, 0.0)
    x_recon = jax.nn.sigmoid(h @ params["output_layer"][0] + params["output_layer"][1])
    return x_recon, mu, logvar


# ----------------------------------------------------------------------------
# Main
# ----------------------------------------------------------------------------
if __name__ == "__main__":
    input_dim = 64       # flattened piano roll dimension (small synthetic size)
    hidden_dims = [64, 32]
    latent_dim = 16
    batch = 8

    root = jax.random.PRNGKey(0)
    k_params, k_x, k_eps = jax.random.split(root, 3)

    params = init_vae_params(k_params, input_dim, hidden_dims, latent_dim)
    padded_params = prepare_padded_params(params)   # one-time, outside hot path

    x = jax.random.uniform(k_x, (batch, input_dim), jnp.float32)
    eps = jax.random.normal(k_eps, (batch, latent_dim), jnp.float32)

    fwd = jax.jit(functools.partial(vae_forward,
                                    n_enc=len(hidden_dims),
                                    n_dec=len(hidden_dims)))
    x_recon, mu, logvar = fwd(padded_params, x, eps)
    jax.block_until_ready((x_recon, mu, logvar))

    assert x_recon.shape == (batch, input_dim)
    assert mu.shape == (batch, latent_dim)
    assert logvar.shape == (batch, latent_dim)

    # correctness vs pure-JAX f32 reference (tolerance loosened for bf16
    # matmul operands with f32 accumulation)
    r_recon, r_mu, r_logvar = vae_forward_ref(params, x, eps)
    assert jnp.allclose(x_recon, r_recon, atol=3e-2, rtol=3e-2)
    assert jnp.allclose(mu, r_mu, atol=3e-2, rtol=3e-2)
    assert jnp.allclose(logvar, r_logvar, atol=3e-2, rtol=3e-2)

    print("KERNEL_OK")
</pallas_src>

<mosaic_0001>
module attributes {stable_mosaic.version = 11 : i64} {
  func.func @_vae_fused_kernel(%arg0: memref<8x128xf32, #tpu.memory_space<vmem>>, %arg1: memref<8x128xf32, #tpu.memory_space<vmem>>, %arg2: memref<128x128xbf16, #tpu.memory_space<vmem>>, %arg3: memref<1x128xf32, #tpu.memory_space<vmem>>, %arg4: memref<128x128xbf16, #tpu.memory_space<vmem>>, %arg5: memref<1x128xf32, #tpu.memory_space<vmem>>, %arg6: memref<128x256xbf16, #tpu.memory_space<vmem>>, %arg7: memref<1x256xf32, #tpu.memory_space<vmem>>, %arg8: memref<128x128xbf16, #tpu.memory_space<vmem>>, %arg9: memref<1x128xf32, #tpu.memory_space<vmem>>, %arg10: memref<128x128xbf16, #tpu.memory_space<vmem>>, %arg11: memref<1x128xf32, #tpu.memory_space<vmem>>, %arg12: memref<128x128xbf16, #tpu.memory_space<vmem>>, %arg13: memref<1x128xf32, #tpu.memory_space<vmem>>, %arg14: memref<8x128xf32, #tpu.memory_space<vmem>>, %arg15: memref<8x128xf32, #tpu.memory_space<vmem>>, %arg16: memref<8x128xf32, #tpu.memory_space<vmem>>) attributes {dimension_semantics = [], scalar_prefetch = 0 : i64, scratch_operands = 0 : i64, tpu.core_type = #tpu.core_type<tc>} {
    %c0 = arith.constant 0 : index
    %c0_0 = arith.constant 0 : index
    %0 = vector.load %arg0[%c0, %c0_0] : memref<8x128xf32, #tpu.memory_space<vmem>>, vector<8x128xf32>
    %1 = arith.truncf %0 : vector<8x128xf32> to vector<8x128xbf16>
    %c0_1 = arith.constant 0 : index
    %c0_2 = arith.constant 0 : index
    %2 = vector.load %arg2[%c0_1, %c0_2] : memref<128x128xbf16, #tpu.memory_space<vmem>>, vector<128x128xbf16>
    %cst = arith.constant dense<0.000000e+00> : vector<8x128xf32>
    %3 = tpu.matmul %1, %2, %cst {dimension_numbers = #tpu.dot_dimension_numbers<[1], [0], [0], [1], [0, 0, 1, 1], [], []>} : vector<8x128xbf16>, vector<128x128xbf16>, vector<8x128xf32> -> vector<8x128xf32>
    %c0_3 = arith.constant 0 : index
    %c0_4 = arith.constant 0 : index
    %4 = vector.load %arg3[%c0_3, %c0_4] : memref<1x128xf32, #tpu.memory_space<vmem>>, vector<1x128xf32>
    %5 = vector.broadcast %4 : vector<1x128xf32> to vector<8x128xf32>
    %6 = arith.addf %3, %5 : vector<8x128xf32>
    %cst_5 = arith.constant 0.000000e+00 : f32
    %7 = vector.broadcast %cst_5 : f32 to vector<8x128xf32>
    %8 = arith.maximumf %6, %7 : vector<8x128xf32>
    %9 = arith.truncf %8 : vector<8x128xf32> to vector<8x128xbf16>
    %c0_6 = arith.constant 0 : index
    %c0_7 = arith.constant 0 : index
    %10 = vector.load %arg4[%c0_6, %c0_7] : memref<128x128xbf16, #tpu.memory_space<vmem>>, vector<128x128xbf16>
    %cst_8 = arith.constant dense<0.000000e+00> : vector<8x128xf32>
    %11 = tpu.matmul %9, %10, %cst_8 {dimension_numbers = #tpu.dot_dimension_numbers<[1], [0], [0], [1], [0, 0, 1, 1], [], []>} : vector<8x128xbf16>, vector<128x128xbf16>, vector<8x128xf32> -> vector<8x128xf32>
    %c0_9 = arith.constant 0 : index
    %c0_10 = arith.constant 0 : index
    %12 = vector.load %arg5[%c0_9, %c0_10] : memref<1x128xf32, #tpu.memory_space<vmem>>, vector<1x128xf32>
    %13 = vector.broadcast %12 : vector<1x128xf32> to vector<8x128xf32>
    %14 = arith.addf %11, %13 : vector<8x128xf32>
    %cst_11 = arith.constant 0.000000e+00 : f32
    %15 = vector.broadcast %cst_11 : f32 to vector<8x128xf32>
    %16 = arith.maximumf %14, %15 : vector<8x128xf32>
    %17 = arith.truncf %16 : vector<8x128xf32> to vector<8x128xbf16>
    %c0_12 = arith.constant 0 : index
    %c0_13 = arith.constant 0 : index
    %18 = vector.load %arg6[%c0_12, %c0_13] : memref<128x256xbf16, #tpu.memory_space<vmem>>, vector<128x256xbf16>
    %cst_14 = arith.constant dense<0.000000e+00> : vector<8x256xf32>
    %19 = tpu.matmul %17, %18, %cst_14 {dimension_numbers = #tpu.dot_dimension_numbers<[1], [0], [0], [1], [0, 0, 1, 1], [], []>} : vector<8x128xbf16>, vector<128x256xbf16>, vector<8x256xf32> -> vector<8x256xf32>
    %c0_15 = arith.constant 0 : index
    %c0_16 = arith.constant 0 : index
    %20 = vector.load %arg7[%c0_15, %c0_16] : memref<1x256xf32, #tpu.memory_space<vmem>>, vector<1x256xf32>
    %21 = vector.broadcast %20 : vector<1x256xf32> to vector<8x256xf32>
    %22 = arith.addf %19, %21 : vector<8x256xf32>
    %23 = vector.extract_strided_slice %22 {offsets = [0, 0], sizes = [8, 128], strides = [1, 1]} : vector<8x256xf32> to vector<8x128xf32>
    %24 = vector.extract_strided_slice %22 {offsets = [0, 128], sizes = [8, 128], strides = [1, 1]} : vector<8x256xf32> to vector<8x128xf32>
    %c0_17 = arith.constant 0 : index
    %c0_18 = arith.constant 0 : index
    %25 = vector.load %arg1[%c0_17, %c0_18] : memref<8x128xf32, #tpu.memory_space<vmem>>, vector<8x128xf32>
    %cst_19 = arith.constant 5.000000e-01 : f32
    %26 = vector.broadcast %cst_19 : f32 to vector<8x128xf32>
    %27 = arith.mulf %26, %24 : vector<8x128xf32>
    %28 = math.exp %27 : vector<8x128xf32>
    %29 = arith.mulf %25, %28 : vector<8x128xf32>
    %30 = arith.addf %23, %29 : vector<8x128xf32>
    %31 = arith.truncf %30 : vector<8x128xf32> to vector<8x128xbf16>
    %c0_20 = arith.constant 0 : index
    %c0_21 = arith.constant 0 : index
    %32 = vector.load %arg8[%c0_20, %c0_21] : memref<128x128xbf16, #tpu.memory_space<vmem>>, vector<128x128xbf16>
    %cst_22 = arith.constant dense<0.000000e+00> : vector<8x128xf32>
    %33 = tpu.matmul %31, %32, %cst_22 {dimension_numbers = #tpu.dot_dimension_numbers<[1], [0], [0], [1], [0, 0, 1, 1], [], []>} : vector<8x128xbf16>, vector<128x128xbf16>, vector<8x128xf32> -> vector<8x128xf32>
    %c0_23 = arith.constant 0 : index
    %c0_24 = arith.constant 0 : index
    %34 = vector.load %arg9[%c0_23, %c0_24] : memref<1x128xf32, #tpu.memory_space<vmem>>, vector<1x128xf32>
    %35 = vector.broadcast %34 : vector<1x128xf32> to vector<8x128xf32>
    %36 = arith.addf %33, %35 : vector<8x128xf32>
    %cst_25 = arith.constant 0.000000e+00 : f32
    %37 = vector.broadcast %cst_25 : f32 to vector<8x128xf32>
    %38 = arith.maximumf %36, %37 : vector<8x128xf32>
    %39 = arith.truncf %38 : vector<8x128xf32> to vector<8x128xbf16>
    %c0_26 = arith.constant 0 : index
    %c0_27 = arith.constant 0 : index
    %40 = vector.load %arg10[%c0_26, %c0_27] : memref<128x128xbf16, #tpu.memory_space<vmem>>, vector<128x128xbf16>
    %cst_28 = arith.constant dense<0.000000e+00> : vector<8x128xf32>
    %41 = tpu.matmul %39, %40, %cst_28 {dimension_numbers = #tpu.dot_dimension_numbers<[1], [0], [0], [1], [0, 0, 1, 1], [], []>} : vector<8x128xbf16>, vector<128x128xbf16>, vector<8x128xf32> -> vector<8x128xf32>
    %c0_29 = arith.constant 0 : index
    %c0_30 = arith.constant 0 : index
    %42 = vector.load %arg11[%c0_29, %c0_30] : memref<1x128xf32, #tpu.memory_space<vmem>>, vector<1x128xf32>
    %43 = vector.broadcast %42 : vector<1x128xf32> to vector<8x128xf32>
    %44 = arith.addf %41, %43 : vector<8x128xf32>
    %cst_31 = arith.constant 0.000000e+00 : f32
    %45 = vector.broadcast %cst_31 : f32 to vector<8x128xf32>
    %46 = arith.maximumf %44, %45 : vector<8x128xf32>
    %47 = arith.truncf %46 : vector<8x128xf32> to vector<8x128xbf16>
    %c0_32 = arith.constant 0 : index
    %c0_33 = arith.constant 0 : index
    %48 = vector.load %arg12[%c0_32, %c0_33] : memref<128x128xbf16, #tpu.memory_space<vmem>>, vector<128x128xbf16>
    %cst_34 = arith.constant dense<0.000000e+00> : vector<8x128xf32>
    %49 = tpu.matmul %47, %48, %cst_34 {dimension_numbers = #tpu.dot_dimension_numbers<[1], [0], [0], [1], [0, 0, 1, 1], [], []>} : vector<8x128xbf16>, vector<128x128xbf16>, vector<8x128xf32> -> vector<8x128xf32>
    %c0_35 = arith.constant 0 : index
    %c0_36 = arith.constant 0 : index
    %50 = vector.load %arg13[%c0_35, %c0_36] : memref<1x128xf32, #tpu.memory_space<vmem>>, vector<1x128xf32>
    %51 = vector.broadcast %50 : vector<1x128xf32> to vector<8x128xf32>
    %52 = arith.addf %49, %51 : vector<8x128xf32>
    %53 = arith.negf %52 : vector<8x128xf32>
    %54 = math.exp %53 : vector<8x128xf32>
    %cst_37 = arith.constant 1.000000e+00 : f32
    %55 = vector.broadcast %cst_37 : f32 to vector<8x128xf32>
    %56 = arith.addf %55, %54 : vector<8x128xf32>
    %57 = arith.divf %55, %56 : vector<8x128xf32>
    %c0_38 = arith.constant 0 : index
    %c0_39 = arith.constant 0 : index
    %58 = vector.load %arg14[%c0_38, %c0_39] : memref<8x128xf32, #tpu.memory_space<vmem>>, vector<8x128xf32>
    tpu.vector_store %arg14[%c0_38, %c0_39], %57 {strides = array<i32>} : memref<8x128xf32, #tpu.memory_space<vmem>>, vector<8x128xf32>,
    %c0_40 = arith.constant 0 : index
    %c0_41 = arith.constant 0 : index
    %59 = vector.load %arg15[%c0_40, %c0_41] : memref<8x128xf32, #tpu.memory_space<vmem>>, vector<8x128xf32>
    tpu.vector_store %arg15[%c0_40, %c0_41], %23 {strides = array<i32>} : memref<8x128xf32, #tpu.memory_space<vmem>>, vector<8x128xf32>,
    %c0_42 = arith.constant 0 : index
    %c0_43 = arith.constant 0 : index
    %60 = vector.load %arg16[%c0_42, %c0_43] : memref<8x128xf32, #tpu.memory_space<vmem>>, vector<8x128xf32>
    tpu.vector_store %arg16[%c0_42, %c0_43], %24 {strides = array<i32>} : memref<8x128xf32, #tpu.memory_space<vmem>>, vector<8x128xf32>,
    return
  }
}

</mosaic_0001>

<llo_original>
// kernel: vae_forward.1
$region0: #{vae_forward.1}
  #allocation0 [shape = 'u32[]', space=smem, size = 0x4, offset = 0x4, fixed_abs, tag = 'smem constant byte address 0x4 - core index']
  #allocation1 [shape = 'u32[72,128]{1,0:T(1,128)}', space=vmem, size = 0x9000, scoped, tag = 'internal scratch']
  %s0 = inlined_call_operand.vmem [shape: f32[8,128], index: 0, kind: input, shape index: {}]
  %s1 = inlined_call_operand.vmem [shape: f32[8,128], index: 1, kind: input, shape index: {}]
  %s2 = inlined_call_operand.hbm [shape: bf16[128,128], index: 2, kind: input, shape index: {}]
  %s3 = inlined_call_operand.vmem [shape: f32[1,128], index: 3, kind: input, shape index: {}]
  %s4 = inlined_call_operand.hbm [shape: bf16[128,128], index: 4, kind: input, shape index: {}]
  %s5 = inlined_call_operand.vmem [shape: f32[1,128], index: 5, kind: input, shape index: {}]
  %s6 = inlined_call_operand.hbm [shape: bf16[128,256], index: 6, kind: input, shape index: {}]
  %s7 = inlined_call_operand.vmem [shape: f32[1,256], index: 7, kind: input, shape index: {}]
  %s8 = inlined_call_operand.hbm [shape: bf16[128,128], index: 8, kind: input, shape index: {}]
  %s9 = inlined_call_operand.vmem [shape: f32[1,128], index: 9, kind: input, shape index: {}]
  %s10 = inlined_call_operand.hbm [shape: bf16[128,128], index: 10, kind: input, shape index: {}]
  %s11 = inlined_call_operand.vmem [shape: f32[1,128], index: 11, kind: input, shape index: {}]
  %s12 = inlined_call_operand.hbm [shape: bf16[128,128], index: 12, kind: input, shape index: {}]
  %s13 = inlined_call_operand.vmem [shape: f32[1,128], index: 13, kind: input, shape index: {}]
  %s14 = inlined_call_operand.hbm [shape: f32[8,128], index: 14, kind: output, shape index: {0}]
  %s15 = inlined_call_operand.hbm [shape: f32[8,128], index: 15, kind: output, shape index: {1}]
  %s16 = inlined_call_operand.hbm [shape: f32[8,128], index: 16, kind: output, shape index: {2}]
  %17 = xla_tuple %s14, %s15, %s16
  %s18 = sld [smem:[#allocation0]]
  $region106: #{vae_forward.1} parent=0
    _
  %s20 = ssub.s32 1, %s18
  %s21 = scalar_select 0, %s20, %s18
  $region1: #{vae_forward.1} parent=0
    #allocation2 [shape = 'u8[32768]{0}', space=vmem, size = 0x8000, scoped, tag = 'input window, operand 2, single buffered']
    #allocation3 [shape = 's32[1]{0}', space=sflag, size = 0x4, scoped, tag = 'scoped memory for vae_forward.1']
    #allocation4 [shape = 's32[1]{0}', space=sflag, size = 0x4, scoped, tag = 'scoped memory for vae_forward.1']
    #allocation5 [shape = 'u8[32768]{0}', space=vmem, size = 0x8000, scoped, tag = 'input window, operand 4, single buffered']
    #allocation6 [shape = 's32[1]{0}', space=sflag, size = 0x4, scoped, tag = 'scoped memory for vae_forward.1']
    #allocation7 [shape = 'u8[65536]{0}', space=vmem, size = 0x10000, scoped, tag = 'input window, operand 6, single buffered']
    #allocation8 [shape = 'u8[32768]{0}', space=vmem, size = 0x8000, scoped, tag = 'input window, operand 8, single buffered']
    #allocation9 [shape = 's32[1]{0}', space=sflag, size = 0x4, scoped, tag = 'scoped memory for vae_forward.1']
    #allocation10 [shape = 'u8[32768]{0}', space=vmem, size = 0x8000, scoped, tag = 'input window, operand 10, single buffered']
    #allocation11 [shape = 'u8[32768]{0}', space=vmem, size = 0x8000, scoped, tag = 'input window, operand 12, single buffered']
    #allocation12 [shape = 's32[1]{0}', space=sflag, size = 0x4, scoped, tag = 'scoped memory for vae_forward.1']
    #allocation13 [shape = 'u8[4096]{0}', space=vmem, size = 0x1000, scoped, tag = 'output window, operand 0, single buffered']
    #allocation14 [shape = 'u8[4096]{0}', space=vmem, size = 0x1000, scoped, tag = 'output window, operand 1, single buffered']
    #allocation15 [shape = 's32[1]{0}', space=sflag, size = 0x4, scoped, tag = 'scoped memory for vae_forward.1']
    #allocation16 [shape = 'u8[4096]{0}', space=vmem, size = 0x1000, scoped, tag = 'output window, operand 2, single buffered']
    %22 = vsyncpa [#allocation3], 0
    %23 = vsyncpa [#allocation6], 0
    %24 = vsyncpa [#allocation9], 0
    %25 = vsyncpa [#allocation12], 0
    %26 = vsyncpa [#allocation4], 0
    %27 = vsyncpa [#allocation15], 0
    // Predicated region
    $region2: #{vae_forward.1} parent=1 // pred_check
      _
    $region3: #{vae_forward.1} parent=1 // pred_check_branch
      %29 = sbr.rel (0) target = $region5
    $region4: #{vae_forward.1} parent=1 // pred_region
      _
    $region5: #{vae_forward.1} parent=1 // pred_fallthru
      _
    // Predicated region
    $region6: #{vae_forward.1} parent=1 // pred_check
      _
    $region7: #{vae_forward.1} parent=1 // pred_check_branch
      %31 = sbr.rel (0) target = $region9
    $region8: #{vae_forward.1} parent=1 // pred_region
      _
    $region9: #{vae_forward.1} parent=1 // pred_fallthru
      _
    // Predicated region
    $region10: #{vae_forward.1} parent=1 // pred_check
      _
    $region11: #{vae_forward.1} parent=1 // pred_check_branch
      %33 = sbr.rel (0) target = $region13
    $region12: #{vae_forward.1} parent=1 // pred_region
      %35 = vsyncadd [#allocation3], 0
      %s36 = sshll.u32 %s2, 4
      %s37 = int_to_ptr.hbm [resolvable:$true] %s36
      %s38 = sshll.u32 [#allocation2], 4
      %s39 = int_to_ptr.vmem [resolvable:$true] %s38
      %44 = dma.hbm_to_vmem [thread:$0]  %s37, 1024, %s39, [#allocation3], 64, 64, 4
    $region13: #{vae_forward.1} parent=1 // pred_fallthru
      _
    // Predicated region
    $region14: #{vae_forward.1} parent=1 // pred_check
      _
    $region15: #{vae_forward.1} parent=1 // pred_check_branch
      %46 = sbr.rel (0) target = $region17
    $region16: #{vae_forward.1} parent=1 // pred_region
      _
    $region17: #{vae_forward.1} parent=1 // pred_fallthru
      _
    // Predicated region
    $region18: #{vae_forward.1} parent=1 // pred_check
      _
    $region19: #{vae_forward.1} parent=1 // pred_check_branch
      %48 = sbr.rel (0) target = $region21
    $region20: #{vae_forward.1} parent=1 // pred_region
      %50 = vsyncadd [#allocation6], 0
      %s51 = sshll.u32 %s4, 4
      %s52 = int_to_ptr.hbm [resolvable:$true] %s51
      %s53 = sshll.u32 [#allocation5], 4
      %s54 = int_to_ptr.vmem [resolvable:$true] %s53
      %59 = dma.hbm_to_vmem [thread:$0]  %s52, 1024, %s54, [#allocation6], 64, 64, 4
    $region21: #{vae_forward.1} parent=1 // pred_fallthru
      _
    // Predicated region
    $region22: #{vae_forward.1} parent=1 // pred_check
      _
    $region23: #{vae_forward.1} parent=1 // pred_check_branch
      %61 = sbr.rel (0) target = $region25
    $region24: #{vae_forward.1} parent=1 // pred_region
      _
    $region25: #{vae_forward.1} parent=1 // pred_fallthru
      _
    // Predicated region
    $region26: #{vae_forward.1} parent=1 // pred_check
      _
    $region27: #{vae_forward.1} parent=1 // pred_check_branch
      %63 = sbr.rel (0) target = $region29
    $region28: #{vae_forward.1} parent=1 // pred_region
      %65 = vsyncadd [#allocation6], 0
      %s66 = sshll.u32 %s6, 4
      %s67 = int_to_ptr.hbm [resolvable:$true] %s66
      %s68 = sshll.u32 [#allocation7], 4
      %s69 = int_to_ptr.vmem [resolvable:$true] %s68
      %74 = dma.hbm_to_vmem [thread:$0]  %s67, 2048, %s69, [#allocation6], 128, 128, 8
    $region29: #{vae_forward.1} parent=1 // pred_fallthru
      _
    // Predicated region
    $region30: #{vae_forward.1} parent=1 // pred_check
      _
    $region31: #{vae_forward.1} parent=1 // pred_check_branch
      %76 = sbr.rel (0) target = $region33
    $region32: #{vae_forward.1} parent=1 // pred_region
      _
    $region33: #{vae_forward.1} parent=1 // pred_fallthru
      _
    // Predicated region
    $region34: #{vae_forward.1} parent=1 // pred_check
      _
    $region35: #{vae_forward.1} parent=1 // pred_check_branch
      %78 = sbr.rel (0) target = $region37
    $region36: #{vae_forward.1} parent=1 // pred_region
      %80 = vsyncadd [#allocation9], 0
      %s81 = sshll.u32 %s8, 4
      %s82 = int_to_ptr.hbm [resolvable:$true] %s81
      %s83 = sshll.u32 [#allocation8], 4
      %s84 = int_to_ptr.vmem [resolvable:$true] %s83
      %89 = dma.hbm_to_vmem [thread:$0]  %s82, 1024, %s84, [#allocation9], 64, 64, 4
    $region37: #{vae_forward.1} parent=1 // pred_fallthru
      _
    // Predicated region
    $region38: #{vae_forward.1} parent=1 // pred_check
      _
    $region39: #{vae_forward.1} parent=1 // pred_check_branch
      %91 = sbr.rel (0) target = $region41
    $region40: #{vae_forward.1} parent=1 // pred_region
      _
    $region41: #{vae_forward.1} parent=1 // pred_fallthru
      _
    // Predicated region
    $region42: #{vae_forward.1} parent=1 // pred_check
      _
    $region43: #{vae_forward.1} parent=1 // pred_check_branch
      %93 = sbr.rel (0) target = $region45
    $region44: #{vae_forward.1} parent=1 // pred_region
      %95 = vsyncadd [#allocation9], 0
      %s96 = sshll.u32 %s10, 4
      %s97 = int_to_ptr.hbm [resolvable:$true] %s96
      %s98 = sshll.u32 [#allocation10], 4
      %s99 = int_to_ptr.vmem [resolvable:$true] %s98
      %104 = dma.hbm_to_vmem [thread:$0]  %s97, 1024, %s99, [#allocation9], 64, 64, 4
    $region45: #{vae_forward.1} parent=1 // pred_fallthru
      _
    // Predicated region
    $region46: #{vae_forward.1} parent=1 // pred_check
      _
    $region47: #{vae_forward.1} parent=1 // pred_check_branch
      %106 = sbr.rel (0) target = $region49
    $region48: #{vae_forward.1} parent=1 // pred_region
      _
    $region49: #{vae_forward.1} parent=1 // pred_fallthru
      _
    // Predicated region
    $region50: #{vae_forward.1} parent=1 // pred_check
      _
    $region51: #{vae_forward.1} parent=1 // pred_check_branch
      %108 = sbr.rel (0) target = $region53
    $region52: #{vae_forward.1} parent=1 // pred_region
      %110 = vsyncadd [#allocation12], 0
      %s111 = sshll.u32 %s12, 4
      %s112 = int_to_ptr.hbm [resolvable:$true] %s111
      %s113 = sshll.u32 [#allocation11], 4
      %s114 = int_to_ptr.vmem [resolvable:$true] %s113
      %119 = dma.hbm_to_vmem [thread:$0]  %s112, 1024, %s114, [#allocation12], 64, 64, 4
    $region53: #{vae_forward.1} parent=1 // pred_fallthru
      _
    // Predicated region
    $region54: #{vae_forward.1} parent=1 // pred_check
      _
    $region55: #{vae_forward.1} parent=1 // pred_check_branch
      %121 = sbr.rel (0) target = $region57
    $region56: #{vae_forward.1} parent=1 // pred_region
      _
    $region57: #{vae_forward.1} parent=1 // pred_fallthru
      _
    // Predicated region
    $region58: #{vae_forward.1} parent=1 // pred_check
      _
    $region59: #{vae_forward.1} parent=1 // pred_check_branch
      %123 = sbr.rel (0) target = $region61
    $region60: #{vae_forward.1} parent=1 // pred_region
      %125 = dma.done [#allocation3], 1024
    $region61: #{vae_forward.1} parent=1 // pred_fallthru
      _
    // Predicated region
    $region62: #{vae_forward.1} parent=1 // pred_check
      _
    $region63: #{vae_forward.1} parent=1 // pred_check_branch
      %127 = sbr.rel (0) target = $region65
    $region64: #{vae_forward.1} parent=1 // pred_region
      %129 = dma.done [#allocation6], 1024
    $region65: #{vae_forward.1} parent=1 // pred_fallthru
      _
    // Predicated region
    $region66: #{vae_forward.1} parent=1 // pred_check
      _
    $region67: #{vae_forward.1} parent=1 // pred_check_branch
      %131 = sbr.rel (0) target = $region69
    $region68: #{vae_forward.1} parent=1 // pred_region
      %133 = dma.done [#allocation6], 2048
    $region69: #{vae_forward.1} parent=1 // pred_fallthru
      _
    // Predicated region
    $region70: #{vae_forward.1} parent=1 // pred_check
      _
    $region71: #{vae_forward.1} parent=1 // pred_check_branch
      %135 = sbr.rel (0) target = $region73
    $region72: #{vae_forward.1} parent=1 // pred_region
      %137 = dma.done [#allocation9], 1024
    $region73: #{vae_forward.1} parent=1 // pred_fallthru
      _
    // Predicated region
    $region74: #{vae_forward.1} parent=1 // pred_check
      _
    $region75: #{vae_forward.1} parent=1 // pred_check_branch
      %139 = sbr.rel (0) target = $region77
    $region76: #{vae_forward.1} parent=1 // pred_region
      %141 = dma.done [#allocation9], 1024
    $region77: #{vae_forward.1} parent=1 // pred_fallthru
      _
    // Predicated region
    $region78: #{vae_forward.1} parent=1 // pred_check
      _
    $region79: #{vae_forward.1} parent=1 // pred_check_branch
      %143 = sbr.rel (0) target = $region81
    $region80: #{vae_forward.1} parent=1 // pred_region
      %145 = dma.done [#allocation12], 1024
    $region81: #{vae_forward.1} parent=1 // pred_fallthru
      _
    %v146 = vld [vmem:[%s0] sm:$0xff]
    %v147 = vpack.c.bf16 %v146, %v146
    %v148 = vld [vmem:[#allocation2] sm:$0xf]
    %v149 = vld [vmem:[#allocation2 + $0x4] sm:$0xf]
    %v150 = vld [vmem:[#allocation2 + $0x8] sm:$0xf]
    %v151 = vld [vmem:[#allocation2 + $0xc] sm:$0xf]
    %v152 = vld [vmem:[#allocation2 + $0x10] sm:$0xf]
    %v153 = vld [vmem:[#allocation2 + $0x14] sm:$0xf]
    %v154 = vld [vmem:[#allocation2 + $0x18] sm:$0xf]
    %v155 = vld [vmem:[#allocation2 + $0x1c] sm:$0xf]
    %v156 = vld [vmem:[#allocation2 + $0x20] sm:$0xf]
    %v157 = vld [vmem:[#allocation2 + $0x24] sm:$0xf]
    %v158 = vld [vmem:[#allocation2 + $0x28] sm:$0xf]
    %v159 = vld [vmem:[#allocation2 + $0x2c] sm:$0xf]
    %v160 = vld [vmem:[#allocation2 + $0x30] sm:$0xf]
    %v161 = vld [vmem:[#allocation2 + $0x34] sm:$0xf]
    %v162 = vld [vmem:[#allocation2 + $0x38] sm:$0xf]
    %v163 = vld [vmem:[#allocation2 + $0x3c] sm:$0xf]
    %v164 = vld [vmem:[%s3] sm:$0x1]
    %v166 = vperm.slane %v164, 0
    %v184 = vunpack.c.l.b16 %v148
    %v185 = vunpack.c.l.b16 %v149
    %v186 = vunpack.c.l.b16 %v150
    %v187 = vunpack.c.l.b16 %v151
    %v188 = vunpack.c.l.b16 %v152
    %v189 = vunpack.c.l.b16 %v153
    %v190 = vunpack.c.l.b16 %v154
    %v191 = vunpack.c.l.b16 %v155
    %v192 = vunpack.c.l.b16 %v156
    %v193 = vunpack.c.l.b16 %v157
    %v194 = vunpack.c.l.b16 %v158
    %v195 = vunpack.c.l.b16 %v159
    %v196 = vunpack.c.l.b16 %v160
    %v197 = vunpack.c.l.b16 %v161
    %v198 = vunpack.c.l.b16 %v162
    %v199 = vunpack.c.l.b16 %v163
    %v200 = vpack.c.b16 %v185, %v184
    %v201 = vpack.c.b16 %v187, %v186
    %v202 = vpack.c.b16 %v189, %v188
    %v203 = vpack.c.b16 %v191, %v190
    %v204 = vpack.c.b16 %v193, %v192
    %v205 = vpack.c.b16 %v195, %v194
    %v206 = vpack.c.b16 %v197, %v196
    %v207 = vpack.c.b16 %v199, %v198
    %216 = vmatpush.bf16.msra.mxu0 %v207
    %217 = vmatpush.bf16.msra.mxu0 %v206
    %218 = vmatpush.bf16.msra.mxu0 %v205
    %219 = vmatpush.bf16.msra.mxu0 %v204
    %220 = vmatpush.bf16.msra.mxu0 %v203
    %221 = vmatpush.bf16.msra.mxu0 %v202
    %222 = vmatpush.bf16.msra.mxu0 %v201
    %223 = vmatpush.bf16.msra.mxu0 %v200
    %224 = vmatmul.bf16.gmra.mxu0 %v147
    %v225 = vpop.f32.mrf.mxu0
    %v226 = vadd.f32 %v166, %v225
    %v227 = vpop.f32.mrf.mxu0
    %228 = vdwg.mxu0
    %v229 = vmax.f32 %v226, 0.0
    %v230 = vpack.c.bf16 %v229, %v229
    %v231 = vld [vmem:[#allocation5] sm:$0xf]
    %v232 = vld [vmem:[#allocation5 + $0x4] sm:$0xf]
    %v233 = vld [vmem:[#allocation5 + $0x8] sm:$0xf]
    %v234 = vld [vmem:[#allocation5 + $0xc] sm:$0xf]
    %v235 = vld [vmem:[#allocation5 + $0x10] sm:$0xf]
    %v236 = vld [vmem:[#allocation5 + $0x14] sm:$0xf]
    %v237 = vld [vmem:[#allocation5 + $0x18] sm:$0xf]
    %v238 = vld [vmem:[#allocation5 + $0x1c] sm:$0xf]
    %v239 = vld [vmem:[#allocation5 + $0x20] sm:$0xf]
    %v240 = vld [vmem:[#allocation5 + $0x24] sm:$0xf]
    %v241 = vld [vmem:[#allocation5 + $0x28] sm:$0xf]
    %v242 = vld [vmem:[#allocation5 + $0x2c] sm:$0xf]
    %v243 = vld [vmem:[#allocation5 + $0x30] sm:$0xf]
    %v244 = vld [vmem:[#allocation5 + $0x34] sm:$0xf]
    %v245 = vld [vmem:[#allocation5 + $0x38] sm:$0xf]
    %v246 = vld [vmem:[#allocation5 + $0x3c] sm:$0xf]
    %v247 = vld [vmem:[%s5] sm:$0x1]
    %v249 = vperm.slane %v247, 0
    %v267 = vunpack.c.l.b16 %v231
    %v268 = vunpack.c.l.b16 %v232
    %v269 = vunpack.c.l.b16 %v233
    %v270 = vunpack.c.l.b16 %v234
    %v271 = vunpack.c.l.b16 %v235
    %v272 = vunpack.c.l.b16 %v236
    %v273 = vunpack.c.l.b16 %v237
    %v274 = vunpack.c.l.b16 %v238
    %v275 = vunpack.c.l.b16 %v239
    %v276 = vunpack.c.l.b16 %v240
    %v277 = vunpack.c.l.b16 %v241
    %v278 = vunpack.c.l.b16 %v242
    %v279 = vunpack.c.l.b16 %v243
    %v280 = vunpack.c.l.b16 %v244
    %v281 = vunpack.c.l.b16 %v245
    %v282 = vunpack.c.l.b16 %v246
    %v283 = vpack.c.b16 %v268, %v267
    %v284 = vpack.c.b16 %v270, %v269
    %v285 = vpack.c.b16 %v272, %v271
    %v286 = vpack.c.b16 %v274, %v273
    %v287 = vpack.c.b16 %v276, %v275
    %v288 = vpack.c.b16 %v278, %v277
    %v289 = vpack.c.b16 %v280, %v279
    %v290 = vpack.c.b16 %v282, %v281
    %299 = vmatpush.bf16.msra.mxu0 %v290
    %300 = vmatpush.bf16.msra.mxu0 %v289
    %301 = vmatpush.bf16.msra.mxu0 %v288
    %302 = vmatpush.bf16.msra.mxu0 %v287
    %303 = vmatpush.bf16.msra.mxu0 %v286
    %304 = vmatpush.bf16.msra.mxu0 %v285
    %305 = vmatpush.bf16.msra.mxu0 %v284
    %306 = vmatpush.bf16.msra.mxu0 %v283
    %307 = vmatmul.bf16.gmra.mxu0 %v230
    %v308 = vpop.f32.mrf.mxu0
    %v309 = vadd.f32 %v249, %v308
    %v310 = vpop.f32.mrf.mxu0
    %311 = vdwg.mxu0
    %v312 = vmax.f32 %v309, 0.0
    %v313 = vpack.c.bf16 %v312, %v312
    %v314 = vld [vmem:[#allocation7] sm:$0xff]
    %v315 = vld [vmem:[#allocation7 + $0x8] sm:$0xff]
    %v316 = vld [vmem:[#allocation7 + $0x10] sm:$0xff]
    %v317 = vld [vmem:[#allocation7 + $0x18] sm:$0xff]
    %v318 = vld [vmem:[#allocation7 + $0x20] sm:$0xff]
    %v319 = vld [vmem:[#allocation7 + $0x28] sm:$0xff]
    %v320 = vld [vmem:[#allocation7 + $0x30] sm:$0xff]
    %v321 = vld [vmem:[#allocation7 + $0x38] sm:$0xff]
    %v322 = vld [vmem:[#allocation7 + $0x40] sm:$0xff]
    %v323 = vld [vmem:[#allocation7 + $0x48] sm:$0xff]
    %v324 = vld [vmem:[#allocation7 + $0x50] sm:$0xff]
    %v325 = vld [vmem:[#allocation7 + $0x58] sm:$0xff]
    %v326 = vld [vmem:[#allocation7 + $0x60] sm:$0xff]
    %v327 = vld [vmem:[#allocation7 + $0x68] sm:$0xff]
    %v328 = vld [vmem:[#allocation7 + $0x70] sm:$0xff]
    %v329 = vld [vmem:[#allocation7 + $0x78] sm:$0xff]
    %v330 = vld [vmem:[%s7] sm:$0x3]
    %v332 = vperm.slane %v330, 0
    %v333 = vperm.slane %v330, 1
    %v352 = vunpack.c.l.b16 %v314
    %v353 = vunpack.c.h.b16 %v314
    %v354 = vunpack.c.l.b16 %v315
    %v355 = vunpack.c.h.b16 %v315
    %v356 = vunpack.c.l.b16 %v316
    %v357 = vunpack.c.h.b16 %v316
    %v358 = vunpack.c.l.b16 %v317
    %v359 = vunpack.c.h.b16 %v317
    %v360 = vunpack.c.l.b16 %v318
    %v361 = vunpack.c.h.b16 %v318
    %v362 = vunpack.c.l.b16 %v319
    %v363 = vunpack.c.h.b16 %v319
    %v364 = vunpack.c.l.b16 %v320
    %v365 = vunpack.c.h.b16 %v320
    %v366 = vunpack.c.l.b16 %v321
    %v367 = vunpack.c.h.b16 %v321
    %v368 = vunpack.c.l.b16 %v322
    %v369 = vunpack.c.h.b16 %v322
    %v370 = vunpack.c.l.b16 %v323
    %v371 = vunpack.c.h.b16 %v323
    %v372 = vunpack.c.l.b16 %v324
    %v373 = vunpack.c.h.b16 %v324
    %v374 = vunpack.c.l.b16 %v325
    %v375 = vunpack.c.h.b16 %v325
    %v376 = vunpack.c.l.b16 %v326
    %v377 = vunpack.c.h.b16 %v326
    %v378 = vunpack.c.l.b16 %v327
    %v379 = vunpack.c.h.b16 %v327
    %v380 = vunpack.c.l.b16 %v328
    %v381 = vunpack.c.h.b16 %v328
    %v382 = vunpack.c.l.b16 %v329
    %v383 = vunpack.c.h.b16 %v329
    %v384 = vpack.c.b16 %v354, %v352
    %v385 = vpack.c.b16 %v355, %v353
    %v386 = vpack.c.b16 %v358, %v356
    %v387 = vpack.c.b16 %v359, %v357
    %v388 = vpack.c.b16 %v362, %v360
    %v389 = vpack.c.b16 %v363, %v361
    %v390 = vpack.c.b16 %v366, %v364
    %v391 = vpack.c.b16 %v367, %v365
    %v392 = vpack.c.b16 %v370, %v368
    %v393 = vpack.c.b16 %v371, %v369
    %v394 = vpack.c.b16 %v374, %v372
    %v395 = vpack.c.b16 %v375, %v373
    %v396 = vpack.c.b16 %v378, %v376
    %v397 = vpack.c.b16 %v379, %v377
    %v398 = vpack.c.b16 %v382, %v380
    %v399 = vpack.c.b16 %v383, %v381
    %416 = vmatpush.bf16.msra.mxu0 %v398
    %417 = vmatpush.bf16.msra.mxu0 %v396
    %418 = vmatpush.bf16.msra.mxu0 %v394
    %419 = vmatpush.bf16.msra.mxu0 %v392
    %420 = vmatpush.bf16.msra.mxu0 %v390
    %421 = vmatpush.bf16.msra.mxu0 %v388
    %422 = vmatpush.bf16.msra.mxu0 %v386
    %423 = vmatpush.bf16.msra.mxu0 %v384
    %424 = vmatmul.bf16.gmra.mxu0 %v313
    %v425 = vpop.f32.mrf.mxu0
    %v426 = vadd.f32 %v332, %v425
    %v427 = vpop.f32.mrf.mxu0
    %428 = vdwg.mxu0
    %429 = vmatpush.bf16.msra.mxu0 %v399
    %430 = vmatpush.bf16.msra.mxu0 %v397
    %431 = vmatpush.bf16.msra.mxu0 %v395
    %432 = vmatpush.bf16.msra.mxu0 %v393
    %433 = vmatpush.bf16.msra.mxu0 %v391
    %434 = vmatpush.bf16.msra.mxu0 %v389
    %435 = vmatpush.bf16.msra.mxu0 %v387
    %436 = vmatpush.bf16.msra.mxu0 %v385
    %437 = vmatmul.bf16.gmra.mxu0 %v313
    %v438 = vpop.f32.mrf.mxu0
    %v439 = vadd.f32 %v333, %v438
    %v440 = vpop.f32.mrf.mxu0
    %441 = vdwg.mxu0
    %v442 = vld [vmem:[%s1] sm:$0xff]
    %v443 = vmul.f32 %v439, 0.5
    %v444 = vmul.f32 %v443, 1.442695
    %v445 = vpow.pop %v444
    %v446 = vmul.f32 %v442, %v445
    %v447 = vadd.f32 %v426, %v446
    %v448 = vpack.c.bf16 %v447, %v447
    %v449 = vld [vmem:[#allocation8] sm:$0xf]
    %v450 = vld [vmem:[#allocation8 + $0x4] sm:$0xf]
    %v451 = vld [vmem:[#allocation8 + $0x8] sm:$0xf]
    %v452 = vld [vmem:[#allocation8 + $0xc] sm:$0xf]
    %v453 = vld [vmem:[#allocation8 + $0x10] sm:$0xf]
    %v454 = vld [vmem:[#allocation8 + $0x14] sm:$0xf]
    %v455 = vld [vmem:[#allocation8 + $0x18] sm:$0xf]
    %v456 = vld [vmem:[#allocation8 + $0x1c] sm:$0xf]
    %v457 = vld [vmem:[#allocation8 + $0x20] sm:$0xf]
    %v458 = vld [vmem:[#allocation8 + $0x24] sm:$0xf]
    %v459 = vld [vmem:[#allocation8 + $0x28] sm:$0xf]
    %v460 = vld [vmem:[#allocation8 + $0x2c] sm:$0xf]
    %v461 = vld [vmem:[#allocation8 + $0x30] sm:$0xf]
    %v462 = vld [vmem:[#allocation8 + $0x34] sm:$0xf]
    %v463 = vld [vmem:[#allocation8 + $0x38] sm:$0xf]
    %v464 = vld [vmem:[#allocation8 + $0x3c] sm:$0xf]
    %v465 = vld [vmem:[%s9] sm:$0x1]
    %v467 = vperm.slane %v465, 0
    %v485 = vunpack.c.l.b16 %v449
    %v486 = vunpack.c.l.b16 %v450
    %v487 = vunpack.c.l.b16 %v451
    %v488 = vunpack.c.l.b16 %v452
    %v489 = vunpack.c.l.b16 %v453
    %v490 = vunpack.c.l.b16 %v454
    %v491 = vunpack.c.l.b16 %v455
    %v492 = vunpack.c.l.b16 %v456
    %v493 = vunpack.c.l.b16 %v457
    %v494 = vunpack.c.l.b16 %v458
    %v495 = vunpack.c.l.b16 %v459
    %v496 = vunpack.c.l.b16 %v460
    %v497 = vunpack.c.l.b16 %v461
    %v498 = vunpack.c.l.b16 %v462
    %v499 = vunpack.c.l.b16 %v463
    %v500 = vunpack.c.l.b16 %v464
    %v501 = vpack.c.b16 %v486, %v485
    %v502 = vpack.c.b16 %v488, %v487
    %v503 = vpack.c.b16 %v490, %v489
    %v504 = vpack.c.b16 %v492, %v491
    %v505 = vpack.c.b16 %v494, %v493
    %v506 = vpack.c.b16 %v496, %v495
    %v507 = vpack.c.b16 %v498, %v497
    %v508 = vpack.c.b16 %v500, %v499
    %517 = vmatpush.bf16.msra.mxu0 %v508
    %518 = vmatpush.bf16.msra.mxu0 %v507
    %519 = vmatpush.bf16.msra.mxu0 %v506
    %520 = vmatpush.bf16.msra.mxu0 %v505
    %521 = vmatpush.bf16.msra.mxu0 %v504
    %522 = vmatpush.bf16.msra.mxu0 %v503
    %523 = vmatpush.bf16.msra.mxu0 %v502
    %524 = vmatpush.bf16.msra.mxu0 %v501
    %525 = vmatmul.bf16.gmra.mxu0 %v448
    %v526 = vpop.f32.mrf.mxu0
    %v527 = vadd.f32 %v467, %v526
    %v528 = vpop.f32.mrf.mxu0
    %529 = vdwg.mxu0
    %v530 = vmax.f32 %v527, 0.0
    %v531 = vpack.c.bf16 %v530, %v530
    %v532 = vld [vmem:[#allocation10] sm:$0xf]
    %v533 = vld [vmem:[#allocation10 + $0x4] sm:$0xf]
    %v534 = vld [vmem:[#allocation10 + $0x8] sm:$0xf]
    %v535 = vld [vmem:[#allocation10 + $0xc] sm:$0xf]
    %v536 = vld [vmem:[#allocation10 + $0x10] sm:$0xf]
    %v537 = vld [vmem:[#allocation10 + $0x14] sm:$0xf]
    %v538 = vld [vmem:[#allocation10 + $0x18] sm:$0xf]
    %v539 = vld [vmem:[#allocation10 + $0x1c] sm:$0xf]
    %v540 = vld [vmem:[#allocation10 + $0x20] sm:$0xf]
    %v541 = vld [vmem:[#allocation10 + $0x24] sm:$0xf]
    %v542 = vld [vmem:[#allocation10 + $0x28] sm:$0xf]
    %v543 = vld [vmem:[#allocation10 + $0x2c] sm:$0xf]
    %v544 = vld [vmem:[#allocation10 + $0x30] sm:$0xf]
    %v545 = vld [vmem:[#allocation10 + $0x34] sm:$0xf]
    %v546 = vld [vmem:[#allocation10 + $0x38] sm:$0xf]
    %v547 = vld [vmem:[#allocation10 + $0x3c] sm:$0xf]
    %v548 = vld [vmem:[%s11] sm:$0x1]
    %v550 = vperm.slane %v548, 0
    %v568 = vunpack.c.l.b16 %v532
    %v569 = vunpack.c.l.b16 %v533
    %v570 = vunpack.c.l.b16 %v534
    %v571 = vunpack.c.l.b16 %v535
    %v572 = vunpack.c.l.b16 %v536
    %v573 = vunpack.c.l.b16 %v537
    %v574 = vunpack.c.l.b16 %v538
    %v575 = vunpack.c.l.b16 %v539
    %v576 = vunpack.c.l.b16 %v540
    %v577 = vunpack.c.l.b16 %v541
    %v578 = vunpack.c.l.b16 %v542
    %v579 = vunpack.c.l.b16 %v543
    %v580 = vunpack.c.l.b16 %v544
    %v581 = vunpack.c.l.b16 %v545
    %v582 = vunpack.c.l.b16 %v546
    %v583 = vunpack.c.l.b16 %v547
    %v584 = vpack.c.b16 %v569, %v568
    %v585 = vpack.c.b16 %v571, %v570
    %v586 = vpack.c.b16 %v573, %v572
    %v587 = vpack.c.b16 %v575, %v574
    %v588 = vpack.c.b16 %v577, %v576
    %v589 = vpack.c.b16 %v579, %v578
    %v590 = vpack.c.b16 %v581, %v580
    %v591 = vpack.c.b16 %v583, %v582
    %600 = vmatpush.bf16.msra.mxu0 %v591
    %601 = vmatpush.bf16.msra.mxu0 %v590
    %602 = vmatpush.bf16.msra.mxu0 %v589
    %603 = vmatpush.bf16.msra.mxu0 %v588
    %604 = vmatpush.bf16.msra.mxu0 %v587
    %605 = vmatpush.bf16.msra.mxu0 %v586
    %606 = vmatpush.bf16.msra.mxu0 %v585
    %607 = vmatpush.bf16.msra.mxu0 %v584
    %608 = vmatmul.bf16.gmra.mxu0 %v531
    %v609 = vpop.f32.mrf.mxu0
    %v610 = vadd.f32 %v550, %v609
    %v611 = vpop.f32.mrf.mxu0
    %612 = vdwg.mxu0
    %v613 = vmax.f32 %v610, 0.0
    %v614 = vpack.c.bf16 %v613, %v613
    %v615 = vld [vmem:[#allocation11] sm:$0xf]
    %v616 = vld [vmem:[#allocation11 + $0x4] sm:$0xf]
    %v617 = vld [vmem:[#allocation11 + $0x8] sm:$0xf]
    %v618 = vld [vmem:[#allocation11 + $0xc] sm:$0xf]
    %v619 = vld [vmem:[#allocation11 + $0x10] sm:$0xf]
    %v620 = vld [vmem:[#allocation11 + $0x14] sm:$0xf]
    %v621 = vld [vmem:[#allocation11 + $0x18] sm:$0xf]
    %v622 = vld [vmem:[#allocation11 + $0x1c] sm:$0xf]
    %v623 = vld [vmem:[#allocation11 + $0x20] sm:$0xf]
    %v624 = vld [vmem:[#allocation11 + $0x24] sm:$0xf]
    %v625 = vld [vmem:[#allocation11 + $0x28] sm:$0xf]
    %v626 = vld [vmem:[#allocation11 + $0x2c] sm:$0xf]
    %v627 = vld [vmem:[#allocation11 + $0x30] sm:$0xf]
    %v628 = vld [vmem:[#allocation11 + $0x34] sm:$0xf]
    %v629 = vld [vmem:[#allocation11 + $0x38] sm:$0xf]
    %v630 = vld [vmem:[#allocation11 + $0x3c] sm:$0xf]
    %v631 = vld [vmem:[%s13] sm:$0x1]
    %v633 = vperm.slane %v631, 0
    %v651 = vunpack.c.l.b16 %v615
    %v652 = vunpack.c.l.b16 %v616
    %v653 = vunpack.c.l.b16 %v617
    %v654 = vunpack.c.l.b16 %v618
    %v655 = vunpack.c.l.b16 %v619
    %v656 = vunpack.c.l.b16 %v620
    %v657 = vunpack.c.l.b16 %v621
    %v658 = vunpack.c.l.b16 %v622
    %v659 = vunpack.c.l.b16 %v623
    %v660 = vunpack.c.l.b16 %v624
    %v661 = vunpack.c.l.b16 %v625
    %v662 = vunpack.c.l.b16 %v626
    %v663 = vunpack.c.l.b16 %v627
    %v664 = vunpack.c.l.b16 %v628
    %v665 = vunpack.c.l.b16 %v629
    %v666 = vunpack.c.l.b16 %v630
    %v667 = vpack.c.b16 %v652, %v651
    %v668 = vpack.c.b16 %v654, %v653
    %v669 = vpack.c.b16 %v656, %v655
    %v670 = vpack.c.b16 %v658, %v657
    %v671 = vpack.c.b16 %v660, %v659
    %v672 = vpack.c.b16 %v662, %v661
    %v673 = vpack.c.b16 %v664, %v663
    %v674 = vpack.c.b16 %v666, %v665
    %683 = vmatpush.bf16.msra.mxu0 %v674
    %684 = vmatpush.bf16.msra.mxu0 %v673
    %685 = vmatpush.bf16.msra.mxu0 %v672
    %686 = vmatpush.bf16.msra.mxu0 %v671
    %687 = vmatpush.bf16.msra.mxu0 %v670
    %688 = vmatpush.bf16.msra.mxu0 %v669
    %689 = vmatpush.bf16.msra.mxu0 %v668
    %690 = vmatpush.bf16.msra.mxu0 %v667
    %691 = vmatmul.bf16.gmra.mxu0 %v614
    %v692 = vpop.f32.mrf.mxu0
    %v693 = vadd.f32 %v633, %v692
    %v694 = vpop.f32.mrf.mxu0
    %695 = vdwg.mxu0
    %v696 = vxor.u32 %v693, 2147483648
    %v697 = vmul.f32 %v696, 1.442695
    %v698 = vpow.pop %v697
    %v699 = vadd.f32 %v698, 1.0
    %v700 = vrcp.pop %v699
    %v701 = vmul.f32 %v699, %v700
    %v702 = vsub.f32 1.0, %v701
    %v703 = vmul.f32 %v700, %v702
    %v704 = vadd.f32 %v700, %v703
    %vm705 = vweird.f32 %v699
    %vm706 = vweird.f32 %v700
    %vm707 = vmor %vm705, %vm706
    %v708 = vsel %vm707, %v700, %v704
    %v709 = vand.u32 2147483647, %v699
    %vm710 = vcmp.eq.f32.partialorder %v709, 8.507059e+37
    %v711 = vand.u32 %v699, 2147483648
    %v712 = vor.u32 1.1754944e-38, %v711
    %v713 = vsel %vm710, %v712, %v708
    %v714 = vmul.f32 1.0, %v713
    %715 = vst [vmem:[#allocation13] sm:$0xff] %v714
    %716 = vst [vmem:[#allocation14] sm:$0xff] %v426
    %717 = vst [vmem:[#allocation16] sm:$0xff] %v439
    // Predicated region
    $region82: #{vae_forward.1} parent=1 // pred_check
      _
    $region83: #{vae_forward.1} parent=1 // pred_check_branch
      %719 = sbr.rel (0) target = $region85
    $region84: #{vae_forward.1} parent=1 // pred_region
      %721 = vsyncadd [#allocation4], 0
      %s723 = sshll.u32 [#allocation13], 4
      %s724 = int_to_ptr.vmem [resolvable:$true] %s723
      %s725 = sshll.u32 %s14, 4
      %s726 = int_to_ptr.hbm [resolvable:$true] %s725
      %728 = dma.vmem_to_hbm [thread:$0]  %s724, 128, %s726, [#allocation4]
    $region85: #{vae_forward.1} parent=1 // pred_fallthru
      _
    // Predicated region
    $region86: #{vae_forward.1} parent=1 // pred_check
      _
    $region87: #{vae_forward.1} parent=1 // pred_check_branch
      %730 = sbr.rel (0) target = $region89
    $region88: #{vae_forward.1} parent=1 // pred_region
      %732 = vsyncadd [#allocation15], 0
      %s734 = sshll.u32 [#allocation14], 4
      %s735 = int_to_ptr.vmem [resolvable:$true] %s734
      %s736 = sshll.u32 %s15, 4
      %s737 = int_to_ptr.hbm [resolvable:$true] %s736
      %739 = dma.vmem_to_hbm [thread:$0]  %s735, 128, %s737, [#allocation15]
    $region89: #{vae_forward.1} parent=1 // pred_fallthru
      _
    // Predicated region
    $region90: #{vae_forward.1} parent=1 // pred_check
      _
    $region91: #{vae_forward.1} parent=1 // pred_check_branch
      %741 = sbr.rel (0) target = $region93
    $region92: #{vae_forward.1} parent=1 // pred_region
      %743 = vsyncadd [#allocation15], 0
      %s745 = sshll.u32 [#allocation16], 4
      %s746 = int_to_ptr.vmem [resolvable:$true] %s745
      %s747 = sshll.u32 %s16, 4
      %s748 = int_to_ptr.hbm [resolvable:$true] %s747
      %750 = dma.vmem_to_hbm [thread:$0]  %s746, 128, %s748, [#allocation15]
    $region93: #{vae_forward.1} parent=1 // pred_fallthru
      _
    // Predicated region
    $region94: #{vae_forward.1} parent=1 // pred_check
      _
    $region95: #{vae_forward.1} parent=1 // pred_check_branch
      %752 = sbr.rel (0) target = $region97
    $region96: #{vae_forward.1} parent=1 // pred_region
      %754 = dma.done [#allocation4], 128
    $region97: #{vae_forward.1} parent=1 // pred_fallthru
      _
    // Predicated region
    $region98: #{vae_forward.1} parent=1 // pred_check
      _
    $region99: #{vae_forward.1} parent=1 // pred_check_branch
      %756 = sbr.rel (0) target = $region101
    $region100: #{vae_forward.1} parent=1 // pred_region
      %758 = dma.done [#allocation15], 128
    $region101: #{vae_forward.1} parent=1 // pred_fallthru
      _
    // Predicated region
    $region102: #{vae_forward.1} parent=1 // pred_check
      _
    $region103: #{vae_forward.1} parent=1 // pred_check_branch
      %760 = sbr.rel (0) target = $region105
    $region104: #{vae_forward.1} parent=1 // pred_region
      %762 = dma.done [#allocation15], 128
    $region105: #{vae_forward.1} parent=1 // pred_fallthru
      _
    %763 = vsyncpa [#allocation3], 1
    %764 = vsyncpa [#allocation6], 1
    %765 = vsyncpa [#allocation9], 1
    %766 = vsyncpa [#allocation12], 1
    %767 = vsyncpa [#allocation4], 1
    %768 = vsyncpa [#allocation15], 1

</llo_original>
